<compile_context>
chip_gen: v5e
topology: v5e:2x2
jax: 0.10.0
libtpu: 0.0.40
codegen_flags: <defaults>
</compile_context>

<pallas_src>
import math
import jax
import jax.numpy as jnp
from jax.experimental import pallas as pl
from jax.experimental.pallas import tpu as pltpu

SCALE = 100.0  # sigmoid sharpness used by dect's compute_ecc


def _round_up(x, m):
    return ((x + m - 1) // m) * m


def _wdect_kernel(bidx_ref, x_ref, nw_ref, v_ref, lin_ref,
                  w1_ref, b1_ref, w2_ref, b2_ref,
                  logits_ref, flat_ref):
    # bidx_ref   [1, Nt]   int32 graph assignment for this node tile
    # x_ref      [Nt, 2]   node coordinates
    # nw_ref     [Nt, 1]   node weights
    # v_ref      [2, S*D]  direction vectors pre-tiled step-major/dir-minor
    # lin_ref    [1, S*D]  bump-step values repeated per direction
    # w1_ref [S*D, H], b1_ref [1, H], w2_ref [H, Cp], b2_ref [1, Cp]
    # outputs:   logits_ref [Gt, Cp], flat_ref [Gt, S*D]  (resident over node axis)
    gt = flat_ref.shape[0]
    nt = bidx_ref.shape[1]

    @pl.when(pl.program_id(1) == 0)
    def _():
        flat_ref[...] = jnp.zeros_like(flat_ref)

    # Node heights directly in the final [Nt, S*D] column layout — pure VPU, no MXU.
    xw = x_ref[...] * nw_ref[...]                                 # [Nt, 2]
    vt = v_ref[...]                                               # [2, S*D]
    nh = xw[:, 0:1] * vt[0:1, :] + xw[:, 1:2] * vt[1:2, :]        # [Nt, S*D]

    # Sigmoid in f32 on the EUP; bf16 cast only at the MXU input below.
    sig = jax.nn.sigmoid(SCALE * (lin_ref[...] - nh))             # [Nt, S*D] f32

    # Segment-sum over nodes per graph as a masked matmul; mask built in-kernel.
    gids = pl.program_id(0) * gt + jax.lax.broadcasted_iota(jnp.int32, (gt, nt), 0)
    mask = (gids == bidx_ref[...]).astype(jnp.bfloat16)           # [Gt, Nt] exact 0/1

    flat_ref[...] += jnp.dot(mask, sig.astype(jnp.bfloat16),
                             preferred_element_type=jnp.float32)  # [Gt, S*D]

    # MLP head only once, after the last node tile of this graph block.
    @pl.when(pl.program_id(1) == pl.num_programs(1) - 1)
    def _():
        flat = flat_ref[...]
        h = jnp.maximum(
            jnp.dot(flat, w1_ref[...], preferred_element_type=jnp.float32) + b1_ref[...],
            0.0)
        logits_ref[...] = (
            jnp.dot(h, w2_ref[...], preferred_element_type=jnp.float32) + b2_ref[...])


def wdect_classifier_forward(x, node_weights, batch_idx, num_graphs, params,
                             *, node_tile=1024, graph_tile=8):
    """Pad / pre-tile inputs and run the tiled Pallas kernel."""
    v, lin, w1, b1, w2, b2 = (params[k] for k in ("v", "lin", "w1", "b1", "w2", "b2"))
    N = x.shape[0]
    D = v.shape[1]
    S = lin.shape[0]
    SD = S * D
    H = w1.shape[1]
    C = w2.shape[1]

    # Padded, tile-friendly sizes.
    Gt = graph_tile                                   # sublane-dense graph block (>= 8)
    Gp = _round_up(max(num_graphs, 1), Gt)
    Cp = _round_up(C, 128)                            # lane-dense class dim
    Nt = min(node_tile, _round_up(N, 128))            # node tile, multiple of 128
    Np = _round_up(N, Nt)

    # Pre-tiled parameters (step-major, direction-minor columns).
    v_tiled = jnp.tile(v.astype(jnp.float32), (1, S))                   # [2, S*D]
    lin_rep = jnp.repeat(lin.astype(jnp.float32), D).reshape(1, SD)     # [1, S*D]

    # Padded inputs. Padded nodes get batch index Gp (never matches -> contribute 0).
    x_p = jnp.zeros((Np, 2), jnp.float32).at[:N].set(x)
    nw_p = jnp.zeros((Np, 1), jnp.float32).at[:N, 0].set(node_weights)
    bidx_p = jnp.full((1, Np), Gp, jnp.int32).at[0, :N].set(batch_idx.astype(jnp.int32))
    w2_p = jnp.zeros((H, Cp), jnp.float32).at[:, :C].set(w2)
    b2_p = jnp.zeros((1, Cp), jnp.float32).at[0, :C].set(b2)
    b1_r = b1.reshape(1, H)

    grid = (Gp // Gt, Np // Nt)

    logits_p, flat_p = pl.pallas_call(
        _wdect_kernel,
        out_shape=(
            jax.ShapeDtypeStruct((Gp, Cp), jnp.float32),
            jax.ShapeDtypeStruct((Gp, SD), jnp.float32),
        ),
        grid_spec=pltpu.PrefetchScalarGridSpec(
            num_scalar_prefetch=0,
            grid=grid,
            in_specs=[
                pl.BlockSpec((1, Nt), lambda g, n: (0, n)),   # batch index row
                pl.BlockSpec((Nt, 2), lambda g, n: (n, 0)),   # x
                pl.BlockSpec((Nt, 1), lambda g, n: (n, 0)),   # node weights
                pl.BlockSpec((2, SD), lambda g, n: (0, 0)),   # v tiled
                pl.BlockSpec((1, SD), lambda g, n: (0, 0)),   # lin repeated
                pl.BlockSpec((SD, H), lambda g, n: (0, 0)),   # W1
                pl.BlockSpec((1, H), lambda g, n: (0, 0)),    # b1
                pl.BlockSpec((H, Cp), lambda g, n: (0, 0)),   # W2 (class-padded)
                pl.BlockSpec((1, Cp), lambda g, n: (0, 0)),   # b2 (class-padded)
            ],
            out_specs=(
                pl.BlockSpec((Gt, Cp), lambda g, n: (g, 0)),  # logits (resident over n)
                pl.BlockSpec((Gt, SD), lambda g, n: (g, 0)),  # flat ECT accumulator
            ),
        ),
        compiler_params=pltpu.CompilerParams(
            dimension_semantics=("parallel", "arbitrary"),
            vmem_limit_bytes=32 * 1024 * 1024,   # explicit budget (v7x-safe tile sizes)
        ),
    )(bidx_p, x_p, nw_p, v_tiled, lin_rep, w1, b1_r, w2_p, b2_p)

    return logits_p[:num_graphs, :C], flat_p[:num_graphs, :]


def _reference_forward(x, node_weights, batch_idx, num_graphs, params):
    """Pure-JAX replica of the PyTorch forward (points, normalized=False)."""
    v, lin, w1, b1, w2, b2 = (params[k] for k in ("v", "lin", "w1", "b1", "w2", "b2"))
    nh = (x * node_weights[:, None]) @ v                              # [N, D]
    ecc = jax.nn.sigmoid(SCALE * (lin[:, None, None] - nh[None]))     # [S, N, D]
    ecc = jnp.moveaxis(ecc, 0, 1)                                     # [N, S, D]
    ect = jnp.zeros((num_graphs,) + ecc.shape[1:], jnp.float32).at[batch_idx].add(ecc)
    flat = ect.reshape(num_graphs, -1)
    h = jax.nn.relu(flat @ w1 + b1)
    return h @ w2 + b2, flat


if __name__ == "__main__":
    # Config (small): radius=1.1, bump_steps S=16, num_directions D=8,
    # hidden_dim H=32, num_classes C=3, ect_type='points', normalized=False.
    radius, S, D, H, C = 1.1, 16, 8, 32, 3
    G, nodes_per_graph = 4, 16
    N = G * nodes_per_graph

    key = jax.random.PRNGKey(0)
    k_x, k_w, k_w1, k_b1, k_w2, k_b2 = jax.random.split(key, 6)

    # Batch (synthetic): 2-D point clouds, per-node weights, graph assignment.
    x = jax.random.uniform(k_x, (N, 2), jnp.float32, minval=-1.0, maxval=1.0)
    node_weights = jax.random.uniform(k_w, (N,), jnp.float32, minval=0.1, maxval=1.0)
    batch_idx = jnp.repeat(jnp.arange(G, dtype=jnp.int32), nodes_per_graph)

    # Deterministic parameters (module __init__ shapes).
    angles = jnp.arange(D, dtype=jnp.float32) * (2.0 * math.pi / D)
    params = {
        "v": jnp.stack([jnp.cos(angles), jnp.sin(angles)], axis=0),      # [2, D]
        "lin": jnp.linspace(-radius, radius, S, dtype=jnp.float32),      # [S]
        "w1": 0.1 * jax.random.normal(k_w1, (S * D, H), jnp.float32),    # fc1 weight (transposed)
        "b1": 0.1 * jax.random.normal(k_b1, (H,), jnp.float32),
        "w2": 0.1 * jax.random.normal(k_w2, (H, C), jnp.float32),        # fc2 weight (transposed)
        "b2": 0.1 * jax.random.normal(k_b2, (C,), jnp.float32),
    }

    logits, flat = wdect_classifier_forward(x, node_weights, batch_idx, G, params)
    jax.block_until_ready((logits, flat))

    ref_logits, ref_flat = _reference_forward(x, node_weights, batch_idx, G, params)
    # Tolerances account for bf16 MXU inputs in the segment-sum matmul (~1e-3 rel).
    assert jnp.allclose(flat, ref_flat, atol=5e-2, rtol=1e-2), "ECT features mismatch"
    assert jnp.allclose(logits, ref_logits, atol=5e-2, rtol=1e-2), "logits mismatch"

    # TODO(synk): compute_loss (cross-entropy + L2 of feats) is training-only glue and
    # is left in plain JAX if needed; only the forward pass is kernelized here.
    print("KERNEL_OK")
</pallas_src>

<mosaic_0001>
module attributes {stable_mosaic.version = 11 : i64} {
  func.func @_wdect_kernel(%arg0: i32, %arg1: i32, %arg2: memref<1x128xi32, #tpu.memory_space<vmem>>, %arg3: memref<128x2xf32, #tpu.memory_space<vmem>>, %arg4: memref<128x1xf32, #tpu.memory_space<vmem>>, %arg5: memref<2x128xf32, #tpu.memory_space<vmem>>, %arg6: memref<1x128xf32, #tpu.memory_space<vmem>>, %arg7: memref<128x32xf32, #tpu.memory_space<vmem>>, %arg8: memref<1x32xf32, #tpu.memory_space<vmem>>, %arg9: memref<32x128xf32, #tpu.memory_space<vmem>>, %arg10: memref<1x128xf32, #tpu.memory_space<vmem>>, %arg11: memref<8x128xf32, #tpu.memory_space<vmem>>, %arg12: memref<8x128xf32, #tpu.memory_space<vmem>>) attributes {dimension_semantics = [#tpu.dimension_semantics<parallel>, #tpu.dimension_semantics<arbitrary>], iteration_bounds = array<i64: 1, 1>, scalar_prefetch = 0 : i64, scratch_operands = 0 : i64, tpu.core_type = #tpu.core_type<tc>, window_params = [{transform_indices = @transform_0, window_bounds = array<i64: 1, 128>}, {transform_indices = @transform_1, window_bounds = array<i64: 128, 2>}, {transform_indices = @transform_2, window_bounds = array<i64: 128, 1>}, {pipeline_mode = #tpu.pipeline_mode<synchronous>, transform_indices = @transform_3, window_bounds = array<i64: 2, 128>}, {pipeline_mode = #tpu.pipeline_mode<synchronous>, transform_indices = @transform_4, window_bounds = array<i64: 1, 128>}, {pipeline_mode = #tpu.pipeline_mode<synchronous>, transform_indices = @transform_5, window_bounds = array<i64: 128, 32>}, {pipeline_mode = #tpu.pipeline_mode<synchronous>, transform_indices = @transform_6, window_bounds = array<i64: 1, 32>}, {pipeline_mode = #tpu.pipeline_mode<synchronous>, transform_indices = @transform_7, window_bounds = array<i64: 32, 128>}, {pipeline_mode = #tpu.pipeline_mode<synchronous>, transform_indices = @transform_8, window_bounds = array<i64: 1, 128>}, {transform_indices = @transform_9, window_bounds = array<i64: 8, 128>}, {transform_indices = @transform_10, window_bounds = array<i64: 8, 128>}]} {
    %c0_i32 = arith.constant 0 : i32
    %0 = arith.cmpi eq, %arg1, %c0_i32 : i32
    %1 = arith.extui %0 : i1 to i32
    %c0_i32_0 = arith.constant 0 : i32
    %2 = arith.cmpi ne, %1, %c0_i32_0 : i32
    scf.if %2 {
      %cst_18 = arith.constant 0.000000e+00 : f32
      %47 = vector.broadcast %cst_18 : f32 to vector<8x128xf32>
      %c0_19 = arith.constant 0 : index
      %c0_20 = arith.constant 0 : index
      %48 = vector.load %arg12[%c0_19, %c0_20] : memref<8x128xf32, #tpu.memory_space<vmem>>, vector<8x128xf32>
      tpu.vector_store %arg12[%c0_19, %c0_20], %47 {strides = array<i32>} : memref<8x128xf32, #tpu.memory_space<vmem>>, vector<8x128xf32>,
    } else {
    }
    %c0 = arith.constant 0 : index
    %c0_1 = arith.constant 0 : index
    %3 = vector.load %arg3[%c0, %c0_1] : memref<128x2xf32, #tpu.memory_space<vmem>>, vector<128x2xf32>
    %c0_2 = arith.constant 0 : index
    %c0_3 = arith.constant 0 : index
    %4 = vector.load %arg4[%c0_2, %c0_3] : memref<128x1xf32, #tpu.memory_space<vmem>>, vector<128x1xf32>
    %5 = vector.broadcast %4 : vector<128x1xf32> to vector<128x2xf32>
    %6 = arith.mulf %3, %5 : vector<128x2xf32>
    %c0_4 = arith.constant 0 : index
    %c0_5 = arith.constant 0 : index
    %7 = vector.load %arg5[%c0_4, %c0_5] : memref<2x128xf32, #tpu.memory_space<vmem>>, vector<2x128xf32>
    %8 = vector.extract_strided_slice %6 {offsets = [0, 0], sizes = [128, 1], strides = [1, 1]} : vector<128x2xf32> to vector<128x1xf32>
    %9 = vector.extract_strided_slice %7 {offsets = [0, 0], sizes = [1, 128], strides = [1, 1]} : vector<2x128xf32> to vector<1x128xf32>
    %10 = vector.broadcast %8 : vector<128x1xf32> to vector<128x128xf32>
    %11 = vector.broadcast %9 : vector<1x128xf32> to vector<128x128xf32>
    %12 = arith.mulf %10, %11 : vector<128x128xf32>
    %13 = vector.extract_strided_slice %6 {offsets = [0, 1], sizes = [128, 1], strides = [1, 1]} : vector<128x2xf32> to vector<128x1xf32>
    %14 = vector.extract_strided_slice %7 {offsets = [1, 0], sizes = [1, 128], strides = [1, 1]} : vector<2x128xf32> to vector<1x128xf32>
    %15 = vector.broadcast %13 : vector<128x1xf32> to vector<128x128xf32>
    %16 = vector.broadcast %14 : vector<1x128xf32> to vector<128x128xf32>
    %17 = arith.mulf %15, %16 : vector<128x128xf32>
    %18 = arith.addf %12, %17 : vector<128x128xf32>
    %c0_6 = arith.constant 0 : index
    %c0_7 = arith.constant 0 : index
    %19 = vector.load %arg6[%c0_6, %c0_7] : memref<1x128xf32, #tpu.memory_space<vmem>>, vector<1x128xf32>
    %20 = vector.broadcast %19 : vector<1x128xf32> to vector<128x128xf32>
    %21 = arith.subf %20, %18 : vector<128x128xf32>
    %cst = arith.constant 1.000000e+02 : f32
    %22 = vector.broadcast %cst : f32 to vector<128x128xf32>
    %23 = arith.mulf %22, %21 : vector<128x128xf32>
    %24 = arith.negf %23 : vector<128x128xf32>
    %25 = math.exp %24 : vector<128x128xf32>
    %cst_8 = arith.constant 1.000000e+00 : f32
    %26 = vector.broadcast %cst_8 : f32 to vector<128x128xf32>
    %27 = arith.addf %26, %25 : vector<128x128xf32>
    %28 = arith.divf %26, %27 : vector<128x128xf32>
    %c8_i32 = arith.constant 8 : i32
    %29 = arith.muli %arg0, %c8_i32 : i32
    %30 = tpu.iota {dimensions = array<i32: 0>} : vector<8x128xi32>
    %31 = vector.broadcast %29 : i32 to vector<8x128xi32>
    %32 = arith.addi %31, %30 : vector<8x128xi32>
    %c0_9 = arith.constant 0 : index
    %c0_10 = arith.constant 0 : index
    %33 = vector.load %arg2[%c0_9, %c0_10] : memref<1x128xi32, #tpu.memory_space<vmem>>, vector<1x128xi32>
    %34 = vector.broadcast %33 : vector<1x128xi32> to vector<8x128xi32>
    %35 = arith.cmpi eq, %32, %34 : vector<8x128xi32>
    %36 = arith.extui %35 : vector<8x128xi1> to vector<8x128xi32>
    %37 = arith.sitofp %36 : vector<8x128xi32> to vector<8x128xf32>
    %38 = arith.truncf %37 : vector<8x128xf32> to vector<8x128xbf16>
    %c0_11 = arith.constant 0 : index
    %c0_12 = arith.constant 0 : index
    %39 = vector.load %arg12[%c0_11, %c0_12] : memref<8x128xf32, #tpu.memory_space<vmem>>, vector<8x128xf32>
    %40 = arith.truncf %28 : vector<128x128xf32> to vector<128x128xbf16>
    %cst_13 = arith.constant dense<0.000000e+00> : vector<8x128xf32>
    %41 = tpu.matmul %38, %40, %cst_13 {dimension_numbers = #tpu.dot_dimension_numbers<[1], [0], [0], [1], [0, 0, 1, 1], [], []>} : vector<8x128xbf16>, vector<128x128xbf16>, vector<8x128xf32> -> vector<8x128xf32>
    %42 = arith.addf %39, %41 : vector<8x128xf32>
    %c0_14 = arith.constant 0 : index
    %c0_15 = arith.constant 0 : index
    %43 = vector.load %arg12[%c0_14, %c0_15] : memref<8x128xf32, #tpu.memory_space<vmem>>, vector<8x128xf32>
    tpu.vector_store %arg12[%c0_14, %c0_15], %42 {strides = array<i32>} : memref<8x128xf32, #tpu.memory_space<vmem>>, vector<8x128xf32>,
    %c0_i32_16 = arith.constant 0 : i32
    %44 = arith.cmpi eq, %arg1, %c0_i32_16 : i32
    %45 = arith.extui %44 : i1 to i32
    %c0_i32_17 = arith.constant 0 : i32
    %46 = arith.cmpi ne, %45, %c0_i32_17 : i32
    scf.if %46 {
      %c0_18 = arith.constant 0 : index
      %c0_19 = arith.constant 0 : index
      %47 = vector.load %arg12[%c0_18, %c0_19] : memref<8x128xf32, #tpu.memory_space<vmem>>, vector<8x128xf32>
      %c0_20 = arith.constant 0 : index
      %c0_21 = arith.constant 0 : index
      %48 = vector.load %arg7[%c0_20, %c0_21] : memref<128x32xf32, #tpu.memory_space<vmem>>, vector<128x32xf32>
      %cst_22 = arith.constant dense<0.000000e+00> : vector<8x32xf32>
      %49 = tpu.matmul %47, %48, %cst_22 {dimension_numbers = #tpu.dot_dimension_numbers<[1], [0], [0], [1], [0, 0, 1, 1], [], []>} : vector<8x128xf32>, vector<128x32xf32>, vector<8x32xf32> -> vector<8x32xf32>
      %c0_23 = arith.constant 0 : index
      %c0_24 = arith.constant 0 : index
      %50 = vector.load %arg8[%c0_23, %c0_24] : memref<1x32xf32, #tpu.memory_space<vmem>>, vector<1x32xf32>
      %51 = vector.broadcast %50 : vector<1x32xf32> to vector<8x32xf32>
      %52 = arith.addf %49, %51 : vector<8x32xf32>
      %cst_25 = arith.constant 0.000000e+00 : f32
      %53 = vector.broadcast %cst_25 : f32 to vector<8x32xf32>
      %54 = arith.maximumf %52, %53 : vector<8x32xf32>
      %c0_26 = arith.constant 0 : index
      %c0_27 = arith.constant 0 : index
      %55 = vector.load %arg9[%c0_26, %c0_27] : memref<32x128xf32, #tpu.memory_space<vmem>>, vector<32x128xf32>
      %cst_28 = arith.constant dense<0.000000e+00> : vector<8x128xf32>
      %56 = tpu.matmul %54, %55, %cst_28 {dimension_numbers = #tpu.dot_dimension_numbers<[1], [0], [0], [1], [0, 0, 1, 1], [], []>} : vector<8x32xf32>, vector<32x128xf32>, vector<8x128xf32> -> vector<8x128xf32>
      %c0_29 = arith.constant 0 : index
      %c0_30 = arith.constant 0 : index
      %57 = vector.load %arg10[%c0_29, %c0_30] : memref<1x128xf32, #tpu.memory_space<vmem>>, vector<1x128xf32>
      %58 = vector.broadcast %57 : vector<1x128xf32> to vector<8x128xf32>
      %59 = arith.addf %56, %58 : vector<8x128xf32>
      %c0_31 = arith.constant 0 : index
      %c0_32 = arith.constant 0 : index
      %60 = vector.load %arg11[%c0_31, %c0_32] : memref<8x128xf32, #tpu.memory_space<vmem>>, vector<8x128xf32>
      tpu.vector_store %arg11[%c0_31, %c0_32], %59 {strides = array<i32>} : memref<8x128xf32, #tpu.memory_space<vmem>>, vector<8x128xf32>,
    } else {
    }
    return
  }
  func.func @transform_0(%arg0: i32, %arg1: i32) -> (i32, i32) {
    %c0_i32 = arith.constant 0 : i32
    %c0_i32_0 = arith.constant 0 : i32
    return %c0_i32, %arg1 : i32, i32
  }
  func.func @transform_1(%arg0: i32, %arg1: i32) -> (i32, i32) {
    %c0_i32 = arith.constant 0 : i32
    %c0_i32_0 = arith.constant 0 : i32
    return %arg1, %c0_i32 : i32, i32
  }
  func.func @transform_2(%arg0: i32, %arg1: i32) -> (i32, i32) {
    %c0_i32 = arith.constant 0 : i32
    %c0_i32_0 = arith.constant 0 : i32
    return %arg1, %c0_i32 : i32, i32
  }
  func.func @transform_3(%arg0: i32, %arg1: i32) -> (i32, i32) {
    %c0_i32 = arith.constant 0 : i32
    %c0_i32_0 = arith.constant 0 : i32
    %c0_i32_1 = arith.constant 0 : i32
    return %c0_i32, %c0_i32_0 : i32, i32
  }
  func.func @transform_4(%arg0: i32, %arg1: i32) -> (i32, i32) {
    %c0_i32 = arith.constant 0 : i32
    %c0_i32_0 = arith.constant 0 : i32
    %c0_i32_1 = arith.constant 0 : i32
    return %c0_i32, %c0_i32_0 : i32, i32
  }
  func.func @transform_5(%arg0: i32, %arg1: i32) -> (i32, i32) {
    %c0_i32 = arith.constant 0 : i32
    %c0_i32_0 = arith.constant 0 : i32
    %c0_i32_1 = arith.constant 0 : i32
    return %c0_i32, %c0_i32_0 : i32, i32
  }
  func.func @transform_6(%arg0: i32, %arg1: i32) -> (i32, i32) {
    %c0_i32 = arith.constant 0 : i32
    %c0_i32_0 = arith.constant 0 : i32
    %c0_i32_1 = arith.constant 0 : i32
    return %c0_i32, %c0_i32_0 : i32, i32
  }
  func.func @transform_7(%arg0: i32, %arg1: i32) -> (i32, i32) {
    %c0_i32 = arith.constant 0 : i32
    %c0_i32_0 = arith.constant 0 : i32
    %c0_i32_1 = arith.constant 0 : i32
    return %c0_i32, %c0_i32_0 : i32, i32
  }
  func.func @transform_8(%arg0: i32, %arg1: i32) -> (i32, i32) {
    %c0_i32 = arith.constant 0 : i32
    %c0_i32_0 = arith.constant 0 : i32
    %c0_i32_1 = arith.constant 0 : i32
    return %c0_i32, %c0_i32_0 : i32, i32
  }
  func.func @transform_9(%arg0: i32, %arg1: i32) -> (i32, i32) {
    %c0_i32 = arith.constant 0 : i32
    %c0_i32_0 = arith.constant 0 : i32
    return %arg0, %c0_i32 : i32, i32
  }
  func.func @transform_10(%arg0: i32, %arg1: i32) -> (i32, i32) {
    %c0_i32 = arith.constant 0 : i32
    %c0_i32_0 = arith.constant 0 : i32
    return %arg0, %c0_i32 : i32, i32
  }
}

</mosaic_0001>

<llo_original>
// kernel: tpu_custom_call.1
$region0: #{tpu_custom_call.1}
  #allocation0 [shape = 'u32[]', space=smem, size = 0x4, offset = 0x4, fixed_abs, tag = 'smem constant byte address 0x4 - core index']
  #allocation1 [shape = 'u32[72,128]{1,0:T(1,128)}', space=vmem, size = 0x9000, scoped, tag = 'internal scratch']
  %s0 = inlined_call_operand.vmem [shape: s32[1,128], index: 0, kind: input, shape index: {}]
  %s1 = inlined_call_operand.vmem [shape: f32[128,2], index: 1, kind: input, shape index: {}]
  %s2 = inlined_call_operand.vmem [shape: f32[128,1], index: 2, kind: input, shape index: {}]
  %s3 = inlined_call_operand.vmem [shape: f32[2,128], index: 3, kind: input, shape index: {}]
  %s4 = inlined_call_operand.vmem [shape: f32[1,128], index: 4, kind: input, shape index: {}]
  %s5 = inlined_call_operand.vmem [shape: f32[128,32], index: 5, kind: input, shape index: {}]
  %s6 = inlined_call_operand.vmem [shape: f32[1,32], index: 6, kind: input, shape index: {}]
  %s7 = inlined_call_operand.vmem [shape: f32[32,128], index: 7, kind: input, shape index: {}]
  %s8 = inlined_call_operand.vmem [shape: f32[1,128], index: 8, kind: input, shape index: {}]
  %s9 = inlined_call_operand.hbm [shape: f32[8,128], index: 9, kind: output, shape index: {0}]
  %s10 = inlined_call_operand.hbm [shape: f32[8,128], index: 10, kind: output, shape index: {1}]
  %11 = xla_tuple %s9, %s10
  %s12 = sld [smem:[#allocation0]]
  $region62: #{tpu_custom_call.1} parent=0
    _
  %s14 = ssub.s32 1, %s12
  %s15 = scalar_select 0, %s14, %s12
  $region1: #{tpu_custom_call.1} parent=0
    #allocation2 [shape = 'u8[4096]{0}', space=vmem, size = 0x1000, scoped, tag = 'output window, operand 0, single buffered']
    #allocation3 [shape = 's32[1]{0}', space=sflag, size = 0x4, scoped, tag = 'scoped memory for tpu_custom_call.1']
    #allocation4 [shape = 'u8[4096]{0}', space=vmem, size = 0x1000, scoped, tag = 'output window, operand 1, single buffered']
    #allocation5 [shape = 's32[1]{0}', space=sflag, size = 0x4, scoped, tag = 'scoped memory for tpu_custom_call.1']
    %16 = vsyncpa [#allocation3], 0
    %17 = vsyncpa [#allocation5], 0
    // Predicated region
    $region2: #{tpu_custom_call.1} parent=1 // pred_check
      _
    $region3: #{tpu_custom_call.1} parent=1 // pred_check_branch
      %19 = sbr.rel (0) target = $region5
    $region4: #{tpu_custom_call.1} parent=1 // pred_region
      _
    $region5: #{tpu_custom_call.1} parent=1 // pred_fallthru
      _
    // Predicated region
    $region6: #{tpu_custom_call.1} parent=1 // pred_check
      _
    $region7: #{tpu_custom_call.1} parent=1 // pred_check_branch
      %21 = sbr.rel (0) target = $region9
    $region8: #{tpu_custom_call.1} parent=1 // pred_region
      _
    $region9: #{tpu_custom_call.1} parent=1 // pred_fallthru
      _
    // Predicated region
    $region10: #{tpu_custom_call.1} parent=1 // pred_check
      _
    $region11: #{tpu_custom_call.1} parent=1 // pred_check_branch
      %23 = sbr.rel (0) target = $region13
    $region12: #{tpu_custom_call.1} parent=1 // pred_region
      _
    $region13: #{tpu_custom_call.1} parent=1 // pred_fallthru
      _
    // Predicated region
    $region14: #{tpu_custom_call.1} parent=1 // pred_check
      _
    $region15: #{tpu_custom_call.1} parent=1 // pred_check_branch
      %25 = sbr.rel (0) target = $region17
    $region16: #{tpu_custom_call.1} parent=1 // pred_region
      _
    $region17: #{tpu_custom_call.1} parent=1 // pred_fallthru
      _
    // Predicated region
    $region18: #{tpu_custom_call.1} parent=1 // pred_check
      _
    $region19: #{tpu_custom_call.1} parent=1 // pred_check_branch
      %27 = sbr.rel (0) target = $region21
    $region20: #{tpu_custom_call.1} parent=1 // pred_region
      _
    $region21: #{tpu_custom_call.1} parent=1 // pred_fallthru
      _
    // Predicated region
    $region22: #{tpu_custom_call.1} parent=1 // pred_check
      _
    $region23: #{tpu_custom_call.1} parent=1 // pred_check_branch
      %29 = sbr.rel (0) target = $region25
    $region24: #{tpu_custom_call.1} parent=1 // pred_region
      _
    $region25: #{tpu_custom_call.1} parent=1 // pred_fallthru
      _
    // Predicated region
    $region26: #{tpu_custom_call.1} parent=1 // pred_check
      _
    $region27: #{tpu_custom_call.1} parent=1 // pred_check_branch
      %31 = sbr.rel (0) target = $region29
    $region28: #{tpu_custom_call.1} parent=1 // pred_region
      _
    $region29: #{tpu_custom_call.1} parent=1 // pred_fallthru
      _
    // Predicated region
    $region30: #{tpu_custom_call.1} parent=1 // pred_check
      _
    $region31: #{tpu_custom_call.1} parent=1 // pred_check_branch
      %33 = sbr.rel (0) target = $region33
    $region32: #{tpu_custom_call.1} parent=1 // pred_region
      _
    $region33: #{tpu_custom_call.1} parent=1 // pred_fallthru
      _
    // Predicated region
    $region34: #{tpu_custom_call.1} parent=1 // pred_check
      _
    $region35: #{tpu_custom_call.1} parent=1 // pred_check_branch
      %35 = sbr.rel (0) target = $region37
    $region36: #{tpu_custom_call.1} parent=1 // pred_region
      _
    $region37: #{tpu_custom_call.1} parent=1 // pred_fallthru
      _
    %p36 = scmp.eq.s32.totalorder 0, 0
    // Predicated region
    $region38: #{tpu_custom_call.1} parent=1 // pred_check
      %p37 = pneg %p36
    $region39: #{tpu_custom_call.1} parent=1 // pred_check_branch
      %39 = sbr.rel (%p37) target = $region41
    $region40: #{tpu_custom_call.1} parent=1 // pred_region
      %40 = vst [vmem:[#allocation4] sm:$0xff] 0.0
    $region41: #{tpu_custom_call.1} parent=1 // pred_fallthru
      _
    %v41 = vld [vmem:[%s1] sm:$0xff]
    %v42 = vld [vmem:[%s1 + $0x8] sm:$0xff]
    %v43 = vld [vmem:[%s1 + $0x10] sm:$0xff]
    %v44 = vld [vmem:[%s1 + $0x18] sm:$0xff]
    %v45 = vld [vmem:[%s1 + $0x20] sm:$0xff]
    %v46 = vld [vmem:[%s1 + $0x28] sm:$0xff]
    %v47 = vld [vmem:[%s1 + $0x30] sm:$0xff]
    %v48 = vld [vmem:[%s1 + $0x38] sm:$0xff]
    %v49 = vld [vmem:[%s1 + $0x40] sm:$0xff]
    %v50 = vld [vmem:[%s1 + $0x48] sm:$0xff]
    %v51 = vld [vmem:[%s1 + $0x50] sm:$0xff]
    %v52 = vld [vmem:[%s1 + $0x58] sm:$0xff]
    %v53 = vld [vmem:[%s1 + $0x60] sm:$0xff]
    %v54 = vld [vmem:[%s1 + $0x68] sm:$0xff]
    %v55 = vld [vmem:[%s1 + $0x70] sm:$0xff]
    %v56 = vld [vmem:[%s1 + $0x78] sm:$0xff]
    %v57 = vld [vmem:[%s2] sm:$0xff]
    %v58 = vld [vmem:[%s2 + $0x8] sm:$0xff]
    %v59 = vld [vmem:[%s2 + $0x10] sm:$0xff]
    %v60 = vld [vmem:[%s2 + $0x18] sm:$0xff]
    %v61 = vld [vmem:[%s2 + $0x20] sm:$0xff]
    %v62 = vld [vmem:[%s2 + $0x28] sm:$0xff]
    %v63 = vld [vmem:[%s2 + $0x30] sm:$0xff]
    %v64 = vld [vmem:[%s2 + $0x38] sm:$0xff]
    %v65 = vld [vmem:[%s2 + $0x40] sm:$0xff]
    %v66 = vld [vmem:[%s2 + $0x48] sm:$0xff]
    %v67 = vld [vmem:[%s2 + $0x50] sm:$0xff]
    %v68 = vld [vmem:[%s2 + $0x58] sm:$0xff]
    %v69 = vld [vmem:[%s2 + $0x60] sm:$0xff]
    %v70 = vld [vmem:[%s2 + $0x68] sm:$0xff]
    %v71 = vld [vmem:[%s2 + $0x70] sm:$0xff]
    %v72 = vld [vmem:[%s2 + $0x78] sm:$0xff]
    %74 = vset.pattern.permute.xlu0 0
    %75 = vperm.xlu0 %74, %v57
    %v76 = vpop.permute.xlu0 %75
    %79 = vset.pattern.permute.xlu0 0
    %80 = vperm.xlu0 %79, %v58
    %v81 = vpop.permute.xlu0 %80
    %84 = vset.pattern.permute.xlu0 0
    %85 = vperm.xlu0 %84, %v59
    %v86 = vpop.permute.xlu0 %85
    %89 = vset.pattern.permute.xlu0 0
    %90 = vperm.xlu0 %89, %v60
    %v91 = vpop.permute.xlu0 %90
    %94 = vset.pattern.permute.xlu0 0
    %95 = vperm.xlu0 %94, %v61
    %v96 = vpop.permute.xlu0 %95
    %99 = vset.pattern.permute.xlu0 0
    %100 = vperm.xlu0 %99, %v62
    %v101 = vpop.permute.xlu0 %100
    %104 = vset.pattern.permute.xlu0 0
    %105 = vperm.xlu0 %104, %v63
    %v106 = vpop.permute.xlu0 %105
    %109 = vset.pattern.permute.xlu0 0
    %110 = vperm.xlu0 %109, %v64
    %v111 = vpop.permute.xlu0 %110
    %114 = vset.pattern.permute.xlu0 0
    %115 = vperm.xlu0 %114, %v65
    %v116 = vpop.permute.xlu0 %115
    %119 = vset.pattern.permute.xlu0 0
    %120 = vperm.xlu0 %119, %v66
    %v121 = vpop.permute.xlu0 %120
    %124 = vset.pattern.permute.xlu0 0
    %125 = vperm.xlu0 %124, %v67
    %v126 = vpop.permute.xlu0 %125
    %129 = vset.pattern.permute.xlu0 0
    %130 = vperm.xlu0 %129, %v68
    %v131 = vpop.permute.xlu0 %130
    %134 = vset.pattern.permute.xlu0 0
    %135 = vperm.xlu0 %134, %v69
    %v136 = vpop.permute.xlu0 %135
    %139 = vset.pattern.permute.xlu0 0
    %140 = vperm.xlu0 %139, %v70
    %v141 = vpop.permute.xlu0 %140
    %144 = vset.pattern.permute.xlu0 0
    %145 = vperm.xlu0 %144, %v71
    %v146 = vpop.permute.xlu0 %145
    %149 = vset.pattern.permute.xlu0 0
    %150 = vperm.xlu0 %149, %v72
    %v151 = vpop.permute.xlu0 %150
    %v153 = vmul.f32 %v41, %v76
    %v154 = vmul.f32 %v42, %v81
    %v155 = vmul.f32 %v43, %v86
    %v156 = vmul.f32 %v44, %v91
    %v157 = vmul.f32 %v45, %v96
    %v158 = vmul.f32 %v46, %v101
    %v159 = vmul.f32 %v47, %v106
    %v160 = vmul.f32 %v48, %v111
    %v161 = vmul.f32 %v49, %v116
    %v162 = vmul.f32 %v50, %v121
    %v163 = vmul.f32 %v51, %v126
    %v164 = vmul.f32 %v52, %v131
    %v165 = vmul.f32 %v53, %v136
    %v166 = vmul.f32 %v54, %v141
    %v167 = vmul.f32 %v55, %v146
    %v168 = vmul.f32 %v56, %v151
    %v169 = vld [vmem:[%s3] sm:$0x3]
    %171 = vset.pattern.permute.xlu0 0
    %172 = vperm.xlu0 %171, %v153
    %v173 = vpop.permute.xlu0 %172
    %176 = vset.pattern.permute.xlu0 0
    %177 = vperm.xlu0 %176, %v154
    %v178 = vpop.permute.xlu0 %177
    %181 = vset.pattern.permute.xlu0 0
    %182 = vperm.xlu0 %181, %v155
    %v183 = vpop.permute.xlu0 %182
    %186 = vset.pattern.permute.xlu0 0
    %187 = vperm.xlu0 %186, %v156
    %v188 = vpop.permute.xlu0 %187
    %191 = vset.pattern.permute.xlu0 0
    %192 = vperm.xlu0 %191, %v157
    %v193 = vpop.permute.xlu0 %192
    %196 = vset.pattern.permute.xlu0 0
    %197 = vperm.xlu0 %196, %v158
    %v198 = vpop.permute.xlu0 %197
    %201 = vset.pattern.permute.xlu0 0
    %202 = vperm.xlu0 %201, %v159
    %v203 = vpop.permute.xlu0 %202
    %206 = vset.pattern.permute.xlu0 0
    %207 = vperm.xlu0 %206, %v160
    %v208 = vpop.permute.xlu0 %207
    %211 = vset.pattern.permute.xlu0 0
    %212 = vperm.xlu0 %211, %v161
    %v213 = vpop.permute.xlu0 %212
    %216 = vset.pattern.permute.xlu0 0
    %217 = vperm.xlu0 %216, %v162
    %v218 = vpop.permute.xlu0 %217
    %221 = vset.pattern.permute.xlu0 0
    %222 = vperm.xlu0 %221, %v163
    %v223 = vpop.permute.xlu0 %222
    %226 = vset.pattern.permute.xlu0 0
    %227 = vperm.xlu0 %226, %v164
    %v228 = vpop.permute.xlu0 %227
    %231 = vset.pattern.permute.xlu0 0
    %232 = vperm.xlu0 %231, %v165
    %v233 = vpop.permute.xlu0 %232
    %236 = vset.pattern.permute.xlu0 0
    %237 = vperm.xlu0 %236, %v166
    %v238 = vpop.permute.xlu0 %237
    %241 = vset.pattern.permute.xlu0 0
    %242 = vperm.xlu0 %241, %v167
    %v243 = vpop.permute.xlu0 %242
    %246 = vset.pattern.permute.xlu0 0
    %247 = vperm.xlu0 %246, %v168
    %v248 = vpop.permute.xlu0 %247
    %v250 = vperm.slane %v169, 0
    %v251 = vmul.f32 %v173, %v250
    %v252 = vmul.f32 %v178, %v250
    %v253 = vmul.f32 %v183, %v250
    %v254 = vmul.f32 %v188, %v250
    %v255 = vmul.f32 %v193, %v250
    %v256 = vmul.f32 %v198, %v250
    %v257 = vmul.f32 %v203, %v250
    %v258 = vmul.f32 %v208, %v250
    %v259 = vmul.f32 %v213, %v250
    %v260 = vmul.f32 %v218, %v250
    %v261 = vmul.f32 %v223, %v250
    %v262 = vmul.f32 %v228, %v250
    %v263 = vmul.f32 %v233, %v250
    %v264 = vmul.f32 %v238, %v250
    %v265 = vmul.f32 %v243, %v250
    %v266 = vmul.f32 %v248, %v250
    %267 = vset.pattern.permute.xlu0 1
    %268 = vperm.xlu0 %267, %v153
    %v269 = vpop.permute.xlu0 %268
    %271 = vset.pattern.permute.xlu0 1
    %272 = vperm.xlu0 %271, %v154
    %v273 = vpop.permute.xlu0 %272
    %275 = vset.pattern.permute.xlu0 1
    %276 = vperm.xlu0 %275, %v155
    %v277 = vpop.permute.xlu0 %276
    %279 = vset.pattern.permute.xlu0 1
    %280 = vperm.xlu0 %279, %v156
    %v281 = vpop.permute.xlu0 %280
    %283 = vset.pattern.permute.xlu0 1
    %284 = vperm.xlu0 %283, %v157
    %v285 = vpop.permute.xlu0 %284
    %287 = vset.pattern.permute.xlu0 1
    %288 = vperm.xlu0 %287, %v158
    %v289 = vpop.permute.xlu0 %288
    %291 = vset.pattern.permute.xlu0 1
    %292 = vperm.xlu0 %291, %v159
    %v293 = vpop.permute.xlu0 %292
    %295 = vset.pattern.permute.xlu0 1
    %296 = vperm.xlu0 %295, %v160
    %v297 = vpop.permute.xlu0 %296
    %299 = vset.pattern.permute.xlu0 1
    %300 = vperm.xlu0 %299, %v161
    %v301 = vpop.permute.xlu0 %300
    %303 = vset.pattern.permute.xlu0 1
    %304 = vperm.xlu0 %303, %v162
    %v305 = vpop.permute.xlu0 %304
    %307 = vset.pattern.permute.xlu0 1
    %308 = vperm.xlu0 %307, %v163
    %v309 = vpop.permute.xlu0 %308
    %311 = vset.pattern.permute.xlu0 1
    %312 = vperm.xlu0 %311, %v164
    %v313 = vpop.permute.xlu0 %312
    %315 = vset.pattern.permute.xlu0 1
    %316 = vperm.xlu0 %315, %v165
    %v317 = vpop.permute.xlu0 %316
    %319 = vset.pattern.permute.xlu0 1
    %320 = vperm.xlu0 %319, %v166
    %v321 = vpop.permute.xlu0 %320
    %323 = vset.pattern.permute.xlu0 1
    %324 = vperm.xlu0 %323, %v167
    %v325 = vpop.permute.xlu0 %324
    %327 = vset.pattern.permute.xlu0 1
    %328 = vperm.xlu0 %327, %v168
    %v329 = vpop.permute.xlu0 %328
    %v331 = vperm.slane %v169, 1
    %v332 = vmul.f32 %v269, %v331
    %v333 = vmul.f32 %v273, %v331
    %v334 = vmul.f32 %v277, %v331
    %v335 = vmul.f32 %v281, %v331
    %v336 = vmul.f32 %v285, %v331
    %v337 = vmul.f32 %v289, %v331
    %v338 = vmul.f32 %v293, %v331
    %v339 = vmul.f32 %v297, %v331
    %v340 = vmul.f32 %v301, %v331
    %v341 = vmul.f32 %v305, %v331
    %v342 = vmul.f32 %v309, %v331
    %v343 = vmul.f32 %v313, %v331
    %v344 = vmul.f32 %v317, %v331
    %v345 = vmul.f32 %v321, %v331
    %v346 = vmul.f32 %v325, %v331
    %v347 = vmul.f32 %v329, %v331
    %v348 = vadd.f32 %v251, %v332
    %v349 = vadd.f32 %v252, %v333
    %v350 = vadd.f32 %v253, %v334
    %v351 = vadd.f32 %v254, %v335
    %v352 = vadd.f32 %v255, %v336
    %v353 = vadd.f32 %v256, %v337
    %v354 = vadd.f32 %v257, %v338
    %v355 = vadd.f32 %v258, %v339
    %v356 = vadd.f32 %v259, %v340
    %v357 = vadd.f32 %v260, %v341
    %v358 = vadd.f32 %v261, %v342
    %v359 = vadd.f32 %v262, %v343
    %v360 = vadd.f32 %v263, %v344
    %v361 = vadd.f32 %v264, %v345
    %v362 = vadd.f32 %v265, %v346
    %v363 = vadd.f32 %v266, %v347
    %v364 = vld [vmem:[%s4] sm:$0x1]
    %v366 = vperm.slane %v364, 0
    %v368 = vsub.f32 %v366, %v348
    %v369 = vsub.f32 %v366, %v349
    %v370 = vsub.f32 %v366, %v350
    %v371 = vsub.f32 %v366, %v351
    %v372 = vsub.f32 %v366, %v352
    %v373 = vsub.f32 %v366, %v353
    %v374 = vsub.f32 %v366, %v354
    %v375 = vsub.f32 %v366, %v355
    %v376 = vsub.f32 %v366, %v356
    %v377 = vsub.f32 %v366, %v357
    %v378 = vsub.f32 %v366, %v358
    %v379 = vsub.f32 %v366, %v359
    %v380 = vsub.f32 %v366, %v360
    %v381 = vsub.f32 %v366, %v361
    %v382 = vsub.f32 %v366, %v362
    %v383 = vsub.f32 %v366, %v363
    %v384 = vmul.f32 %v368, 100.0
    %v385 = vmul.f32 %v369, 100.0
    %v386 = vmul.f32 %v370, 100.0
    %v387 = vmul.f32 %v371, 100.0
    %v388 = vmul.f32 %v372, 100.0
    %v389 = vmul.f32 %v373, 100.0
    %v390 = vmul.f32 %v374, 100.0
    %v391 = vmul.f32 %v375, 100.0
    %v392 = vmul.f32 %v376, 100.0
    %v393 = vmul.f32 %v377, 100.0
    %v394 = vmul.f32 %v378, 100.0
    %v395 = vmul.f32 %v379, 100.0
    %v396 = vmul.f32 %v380, 100.0
    %v397 = vmul.f32 %v381, 100.0
    %v398 = vmul.f32 %v382, 100.0
    %v399 = vmul.f32 %v383, 100.0
    %v400 = vxor.u32 %v384, 2147483648
    %v401 = vxor.u32 %v385, 2147483648
    %v402 = vxor.u32 %v386, 2147483648
    %v403 = vxor.u32 %v387, 2147483648
    %v404 = vxor.u32 %v388, 2147483648
    %v405 = vxor.u32 %v389, 2147483648
    %v406 = vxor.u32 %v390, 2147483648
    %v407 = vxor.u32 %v391, 2147483648
    %v408 = vxor.u32 %v392, 2147483648
    %v409 = vxor.u32 %v393, 2147483648
    %v410 = vxor.u32 %v394, 2147483648
    %v411 = vxor.u32 %v395, 2147483648
    %v412 = vxor.u32 %v396, 2147483648
    %v413 = vxor.u32 %v397, 2147483648
    %v414 = vxor.u32 %v398, 2147483648
    %v415 = vxor.u32 %v399, 2147483648
    %v416 = vmul.f32 %v400, 1.442695
    %v417 = vpow.pop %v416
    %v418 = vmul.f32 %v401, 1.442695
    %v419 = vpow.pop %v418
    %v420 = vmul.f32 %v402, 1.442695
    %v421 = vpow.pop %v420
    %v422 = vmul.f32 %v403, 1.442695
    %v423 = vpow.pop %v422
    %v424 = vmul.f32 %v404, 1.442695
    %v425 = vpow.pop %v424
    %v426 = vmul.f32 %v405, 1.442695
    %v427 = vpow.pop %v426
    %v428 = vmul.f32 %v406, 1.442695
    %v429 = vpow.pop %v428
    %v430 = vmul.f32 %v407, 1.442695
    %v431 = vpow.pop %v430
    %v432 = vmul.f32 %v408, 1.442695
    %v433 = vpow.pop %v432
    %v434 = vmul.f32 %v409, 1.442695
    %v435 = vpow.pop %v434
    %v436 = vmul.f32 %v410, 1.442695
    %v437 = vpow.pop %v436
    %v438 = vmul.f32 %v411, 1.442695
    %v439 = vpow.pop %v438
    %v440 = vmul.f32 %v412, 1.442695
    %v441 = vpow.pop %v440
    %v442 = vmul.f32 %v413, 1.442695
    %v443 = vpow.pop %v442
    %v444 = vmul.f32 %v414, 1.442695
    %v445 = vpow.pop %v444
    %v446 = vmul.f32 %v415, 1.442695
    %v447 = vpow.pop %v446
    %v448 = vadd.f32 %v417, 1.0
    %v449 = vadd.f32 %v419, 1.0
    %v450 = vadd.f32 %v421, 1.0
    %v451 = vadd.f32 %v423, 1.0
    %v452 = vadd.f32 %v425, 1.0
    %v453 = vadd.f32 %v427, 1.0
    %v454 = vadd.f32 %v429, 1.0
    %v455 = vadd.f32 %v431, 1.0
    %v456 = vadd.f32 %v433, 1.0
    %v457 = vadd.f32 %v435, 1.0
    %v458 = vadd.f32 %v437, 1.0
    %v459 = vadd.f32 %v439, 1.0
    %v460 = vadd.f32 %v441, 1.0
    %v461 = vadd.f32 %v443, 1.0
    %v462 = vadd.f32 %v445, 1.0
    %v463 = vadd.f32 %v447, 1.0
    %v464 = vrcp.pop %v448
    %v465 = vmul.f32 %v448, %v464
    %v466 = vsub.f32 1.0, %v465
    %v467 = vmul.f32 %v464, %v466
    %v468 = vadd.f32 %v464, %v467
    %vm469 = vweird.f32 %v448
    %vm470 = vweird.f32 %v464
    %vm471 = vmor %vm469, %vm470
    %v472 = vsel %vm471, %v464, %v468
    %v473 = vand.u32 2147483647, %v448
    %vm474 = vcmp.eq.f32.partialorder %v473, 8.507059e+37
    %v475 = vand.u32 %v448, 2147483648
    %v476 = vor.u32 1.1754944e-38, %v475
    %v477 = vsel %vm474, %v476, %v472
    %v478 = vmul.f32 1.0, %v477
    %v479 = vrcp.pop %v449
    %v480 = vmul.f32 %v449, %v479
    %v481 = vsub.f32 1.0, %v480
    %v482 = vmul.f32 %v479, %v481
    %v483 = vadd.f32 %v479, %v482
    %vm484 = vweird.f32 %v449
    %vm485 = vweird.f32 %v479
    %vm486 = vmor %vm484, %vm485
    %v487 = vsel %vm486, %v479, %v483
    %v488 = vand.u32 2147483647, %v449
    %vm489 = vcmp.eq.f32.partialorder %v488, 8.507059e+37
    %v490 = vand.u32 %v449, 2147483648
    %v491 = vor.u32 1.1754944e-38, %v490
    %v492 = vsel %vm489, %v491, %v487
    %v493 = vmul.f32 1.0, %v492
    %v494 = vrcp.pop %v450
    %v495 = vmul.f32 %v450, %v494
    %v496 = vsub.f32 1.0, %v495
    %v497 = vmul.f32 %v494, %v496
    %v498 = vadd.f32 %v494, %v497
    %vm499 = vweird.f32 %v450
    %vm500 = vweird.f32 %v494
    %vm501 = vmor %vm499, %vm500
    %v502 = vsel %vm501, %v494, %v498
    %v503 = vand.u32 2147483647, %v450
    %vm504 = vcmp.eq.f32.partialorder %v503, 8.507059e+37
    %v505 = vand.u32 %v450, 2147483648
    %v506 = vor.u32 1.1754944e-38, %v505
    %v507 = vsel %vm504, %v506, %v502
    %v508 = vmul.f32 1.0, %v507
    %v509 = vrcp.pop %v451
    %v510 = vmul.f32 %v451, %v509
    %v511 = vsub.f32 1.0, %v510
    %v512 = vmul.f32 %v509, %v511
    %v513 = vadd.f32 %v509, %v512
    %vm514 = vweird.f32 %v451
    %vm515 = vweird.f32 %v509
    %vm516 = vmor %vm514, %vm515
    %v517 = vsel %vm516, %v509, %v513
    %v518 = vand.u32 2147483647, %v451
    %vm519 = vcmp.eq.f32.partialorder %v518, 8.507059e+37
    %v520 = vand.u32 %v451, 2147483648
    %v521 = vor.u32 1.1754944e-38, %v520
    %v522 = vsel %vm519, %v521, %v517
    %v523 = vmul.f32 1.0, %v522
    %v524 = vrcp.pop %v452
    %v525 = vmul.f32 %v452, %v524
    %v526 = vsub.f32 1.0, %v525
    %v527 = vmul.f32 %v524, %v526
    %v528 = vadd.f32 %v524, %v527
    %vm529 = vweird.f32 %v452
    %vm530 = vweird.f32 %v524
    %vm531 = vmor %vm529, %vm530
    %v532 = vsel %vm531, %v524, %v528
    %v533 = vand.u32 2147483647, %v452
    %vm534 = vcmp.eq.f32.partialorder %v533, 8.507059e+37
    %v535 = vand.u32 %v452, 2147483648
    %v536 = vor.u32 1.1754944e-38, %v535
    %v537 = vsel %vm534, %v536, %v532
    %v538 = vmul.f32 1.0, %v537
    %v539 = vrcp.pop %v453
    %v540 = vmul.f32 %v453, %v539
    %v541 = vsub.f32 1.0, %v540
    %v542 = vmul.f32 %v539, %v541
    %v543 = vadd.f32 %v539, %v542
    %vm544 = vweird.f32 %v453
    %vm545 = vweird.f32 %v539
    %vm546 = vmor %vm544, %vm545
    %v547 = vsel %vm546, %v539, %v543
    %v548 = vand.u32 2147483647, %v453
    %vm549 = vcmp.eq.f32.partialorder %v548, 8.507059e+37
    %v550 = vand.u32 %v453, 2147483648
    %v551 = vor.u32 1.1754944e-38, %v550
    %v552 = vsel %vm549, %v551, %v547
    %v553 = vmul.f32 1.0, %v552
    %v554 = vrcp.pop %v454
    %v555 = vmul.f32 %v454, %v554
    %v556 = vsub.f32 1.0, %v555
    %v557 = vmul.f32 %v554, %v556
    %v558 = vadd.f32 %v554, %v557
    %vm559 = vweird.f32 %v454
    %vm560 = vweird.f32 %v554
    %vm561 = vmor %vm559, %vm560
    %v562 = vsel %vm561, %v554, %v558
    %v563 = vand.u32 2147483647, %v454
    %vm564 = vcmp.eq.f32.partialorder %v563, 8.507059e+37
    %v565 = vand.u32 %v454, 2147483648
    %v566 = vor.u32 1.1754944e-38, %v565
    %v567 = vsel %vm564, %v566, %v562
    %v568 = vmul.f32 1.0, %v567
    %v569 = vrcp.pop %v455
    %v570 = vmul.f32 %v455, %v569
    %v571 = vsub.f32 1.0, %v570
    %v572 = vmul.f32 %v569, %v571
    %v573 = vadd.f32 %v569, %v572
    %vm574 = vweird.f32 %v455
    %vm575 = vweird.f32 %v569
    %vm576 = vmor %vm574, %vm575
    %v577 = vsel %vm576, %v569, %v573
    %v578 = vand.u32 2147483647, %v455
    %vm579 = vcmp.eq.f32.partialorder %v578, 8.507059e+37
    %v580 = vand.u32 %v455, 2147483648
    %v581 = vor.u32 1.1754944e-38, %v580
    %v582 = vsel %vm579, %v581, %v577
    %v583 = vmul.f32 1.0, %v582
    %v584 = vrcp.pop %v456
    %v585 = vmul.f32 %v456, %v584
    %v586 = vsub.f32 1.0, %v585
    %v587 = vmul.f32 %v584, %v586
    %v588 = vadd.f32 %v584, %v587
    %vm589 = vweird.f32 %v456
    %vm590 = vweird.f32 %v584
    %vm591 = vmor %vm589, %vm590
    %v592 = vsel %vm591, %v584, %v588
    %v593 = vand.u32 2147483647, %v456
    %vm594 = vcmp.eq.f32.partialorder %v593, 8.507059e+37
    %v595 = vand.u32 %v456, 2147483648
    %v596 = vor.u32 1.1754944e-38, %v595
    %v597 = vsel %vm594, %v596, %v592
    %v598 = vmul.f32 1.0, %v597
    %v599 = vrcp.pop %v457
    %v600 = vmul.f32 %v457, %v599
    %v601 = vsub.f32 1.0, %v600
    %v602 = vmul.f32 %v599, %v601
    %v603 = vadd.f32 %v599, %v602
    %vm604 = vweird.f32 %v457
    %vm605 = vweird.f32 %v599
    %vm606 = vmor %vm604, %vm605
    %v607 = vsel %vm606, %v599, %v603
    %v608 = vand.u32 2147483647, %v457
    %vm609 = vcmp.eq.f32.partialorder %v608, 8.507059e+37
    %v610 = vand.u32 %v457, 2147483648
    %v611 = vor.u32 1.1754944e-38, %v610
    %v612 = vsel %vm609, %v611, %v607
    %v613 = vmul.f32 1.0, %v612
    %v614 = vrcp.pop %v458
    %v615 = vmul.f32 %v458, %v614
    %v616 = vsub.f32 1.0, %v615
    %v617 = vmul.f32 %v614, %v616
    %v618 = vadd.f32 %v614, %v617
    %vm619 = vweird.f32 %v458
    %vm620 = vweird.f32 %v614
    %vm621 = vmor %vm619, %vm620
    %v622 = vsel %vm621, %v614, %v618
    %v623 = vand.u32 2147483647, %v458
    %vm624 = vcmp.eq.f32.partialorder %v623, 8.507059e+37
    %v625 = vand.u32 %v458, 2147483648
    %v626 = vor.u32 1.1754944e-38, %v625
    %v627 = vsel %vm624, %v626, %v622
    %v628 = vmul.f32 1.0, %v627
    %v629 = vrcp.pop %v459
    %v630 = vmul.f32 %v459, %v629
    %v631 = vsub.f32 1.0, %v630
    %v632 = vmul.f32 %v629, %v631
    %v633 = vadd.f32 %v629, %v632
    %vm634 = vweird.f32 %v459
    %vm635 = vweird.f32 %v629
    %vm636 = vmor %vm634, %vm635
    %v637 = vsel %vm636, %v629, %v633
    %v638 = vand.u32 2147483647, %v459
    %vm639 = vcmp.eq.f32.partialorder %v638, 8.507059e+37
    %v640 = vand.u32 %v459, 2147483648
    %v641 = vor.u32 1.1754944e-38, %v640
    %v642 = vsel %vm639, %v641, %v637
    %v643 = vmul.f32 1.0, %v642
    %v644 = vrcp.pop %v460
    %v645 = vmul.f32 %v460, %v644
    %v646 = vsub.f32 1.0, %v645
    %v647 = vmul.f32 %v644, %v646
    %v648 = vadd.f32 %v644, %v647
    %vm649 = vweird.f32 %v460
    %vm650 = vweird.f32 %v644
    %vm651 = vmor %vm649, %vm650
    %v652 = vsel %vm651, %v644, %v648
    %v653 = vand.u32 2147483647, %v460
    %vm654 = vcmp.eq.f32.partialorder %v653, 8.507059e+37
    %v655 = vand.u32 %v460, 2147483648
    %v656 = vor.u32 1.1754944e-38, %v655
    %v657 = vsel %vm654, %v656, %v652
    %v658 = vmul.f32 1.0, %v657
    %v659 = vrcp.pop %v461
    %v660 = vmul.f32 %v461, %v659
    %v661 = vsub.f32 1.0, %v660
    %v662 = vmul.f32 %v659, %v661
    %v663 = vadd.f32 %v659, %v662
    %vm664 = vweird.f32 %v461
    %vm665 = vweird.f32 %v659
    %vm666 = vmor %vm664, %vm665
    %v667 = vsel %vm666, %v659, %v663
    %v668 = vand.u32 2147483647, %v461
    %vm669 = vcmp.eq.f32.partialorder %v668, 8.507059e+37
    %v670 = vand.u32 %v461, 2147483648
    %v671 = vor.u32 1.1754944e-38, %v670
    %v672 = vsel %vm669, %v671, %v667
    %v673 = vmul.f32 1.0, %v672
    %v674 = vrcp.pop %v462
    %v675 = vmul.f32 %v462, %v674
    %v676 = vsub.f32 1.0, %v675
    %v677 = vmul.f32 %v674, %v676
    %v678 = vadd.f32 %v674, %v677
    %vm679 = vweird.f32 %v462
    %vm680 = vweird.f32 %v674
    %vm681 = vmor %vm679, %vm680
    %v682 = vsel %vm681, %v674, %v678
    %v683 = vand.u32 2147483647, %v462
    %vm684 = vcmp.eq.f32.partialorder %v683, 8.507059e+37
    %v685 = vand.u32 %v462, 2147483648
    %v686 = vor.u32 1.1754944e-38, %v685
    %v687 = vsel %vm684, %v686, %v682
    %v688 = vmul.f32 1.0, %v687
    %v689 = vrcp.pop %v463
    %v690 = vmul.f32 %v463, %v689
    %v691 = vsub.f32 1.0, %v690
    %v692 = vmul.f32 %v689, %v691
    %v693 = vadd.f32 %v689, %v692
    %vm694 = vweird.f32 %v463
    %vm695 = vweird.f32 %v689
    %vm696 = vmor %vm694, %vm695
    %v697 = vsel %vm696, %v689, %v693
    %v698 = vand.u32 2147483647, %v463
    %vm699 = vcmp.eq.f32.partialorder %v698, 8.507059e+37
    %v700 = vand.u32 %v463, 2147483648
    %v701 = vor.u32 1.1754944e-38, %v700
    %v702 = vsel %vm699, %v701, %v697
    %v703 = vmul.f32 1.0, %v702
    %s704 = smul.u32 0, 8
    %v705 = vlaneseq
    %v706 = vshrl.u32 %v705, 7
    %v707 = vstv %s704
    %v708 = vadd.s32 %v707, %v706
    %v709 = vld [vmem:[%s0] sm:$0x1]
    %v710 = vperm.slane %v709, 0
    %vm711 = vcmp.eq.s32.totalorder %v708, %v710
    %v712 = vsel %vm711, 1, 0
    %v713 = vcvt.s32.f32 %v712
    %v714 = vpack.c.bf16 %v713, %v713
    %v715 = vld [vmem:[#allocation4] sm:$0xff]
    %v716 = vpack.c.bf16 %v493, %v478
    %v717 = vpack.c.bf16 %v523, %v508
    %v718 = vpack.c.bf16 %v553, %v538
    %v719 = vpack.c.bf16 %v583, %v568
    %v720 = vpack.c.bf16 %v613, %v598
    %v721 = vpack.c.bf16 %v643, %v628
    %v722 = vpack.c.bf16 %v673, %v658
    %v723 = vpack.c.bf16 %v703, %v688
    %724 = vmatpush.bf16.msra.mxu0 %v723
    %725 = vmatpush.bf16.msra.mxu0 %v722
    %726 = vmatpush.bf16.msra.mxu0 %v721
    %727 = vmatpush.bf16.msra.mxu0 %v720
    %728 = vmatpush.bf16.msra.mxu0 %v719
    %729 = vmatpush.bf16.msra.mxu0 %v718
    %730 = vmatpush.bf16.msra.mxu0 %v717
    %731 = vmatpush.bf16.msra.mxu0 %v716
    %732 = vmatmul.bf16.gmra.mxu0 %v714
    %v733 = vpop.f32.mrf.mxu0
    %v734 = vadd.f32 0.0, %v733
    %v735 = vpop.f32.mrf.mxu0
    %736 = vdwg.mxu0
    %v737 = vadd.f32 %v715, %v734
    %738 = vst [vmem:[#allocation4] sm:$0xff] %v737
    // Predicated region
    $region42: #{tpu_custom_call.1} parent=1 // pred_check
      %p739 = pneg %p36
    $region43: #{tpu_custom_call.1} parent=1 // pred_check_branch
      %741 = sbr.rel (%p739) target = $region45
    $region44: #{tpu_custom_call.1} parent=1 // pred_region
      %v742 = vld [vmem:[#allocation4] sm:$0xff]
      %v743 = vld [vmem:[%s5] sm:$0xff]
      %v744 = vld [vmem:[%s5 + $0x8] sm:$0xff]
      %v745 = vld [vmem:[%s5 + $0x10] sm:$0xff]
      %v746 = vld [vmem:[%s5 + $0x18] sm:$0xff]
      %v747 = vld [vmem:[%s5 + $0x20] sm:$0xff]
      %v748 = vld [vmem:[%s5 + $0x28] sm:$0xff]
      %v749 = vld [vmem:[%s5 + $0x30] sm:$0xff]
      %v750 = vld [vmem:[%s5 + $0x38] sm:$0xff]
      %v751 = vld [vmem:[%s5 + $0x40] sm:$0xff]
      %v752 = vld [vmem:[%s5 + $0x48] sm:$0xff]
      %v753 = vld [vmem:[%s5 + $0x50] sm:$0xff]
      %v754 = vld [vmem:[%s5 + $0x58] sm:$0xff]
      %v755 = vld [vmem:[%s5 + $0x60] sm:$0xff]
      %v756 = vld [vmem:[%s5 + $0x68] sm:$0xff]
      %v757 = vld [vmem:[%s5 + $0x70] sm:$0xff]
      %v758 = vld [vmem:[%s5 + $0x78] sm:$0xff]
      %v759 = vld [vmem:[%s6] sm:$0x1]
      %v761 = vperm.slane %v759, 0
      %763 = vmatpush.msra.mxu0 %v758
      %764 = vmatpush.msra.mxu0 %v757
      %765 = vmatpush.msra.mxu0 %v756
      %766 = vmatpush.msra.mxu0 %v755
      %767 = vmatpush.msra.mxu0 %v754
      %768 = vmatpush.msra.mxu0 %v753
      %769 = vmatpush.msra.mxu0 %v752
      %770 = vmatpush.msra.mxu0 %v751
      %771 = vmatpush.msra.mxu0 %v750
      %772 = vmatpush.msra.mxu0 %v749
      %773 = vmatpush.msra.mxu0 %v748
      %774 = vmatpush.msra.mxu0 %v747
      %775 = vmatpush.msra.mxu0 %v746
      %776 = vmatpush.msra.mxu0 %v745
      %777 = vmatpush.msra.mxu0 %v744
      %778 = vmatpush.msra.mxu0 %v743
      %779 = vmatmul.f32.gmra.mxu0 %v742
      %v780 = vpop.f32.mrf.mxu0
      %v781 = vadd.f32 %v761, %v780
      %782 = vdwg.mxu0
      %v783 = vmax.f32 %v781, 0.0
      %v784 = vld [vmem:[%s7] sm:$0xff]
      %v785 = vld [vmem:[%s7 + $0x8] sm:$0xff]
      %v786 = vld [vmem:[%s7 + $0x10] sm:$0xff]
      %v787 = vld [vmem:[%s7 + $0x18] sm:$0xff]
      %v788 = vld [vmem:[%s8] sm:$0x1]
      %v790 = vperm.slane %v788, 0
      %vm792 = vcmask 261120
      %v794 = vsel %vm792, %v783, 0
      %796 = vmatpush.msra.mxu0 0.0
      %797 = vmatpush.msra.mxu0 0.0
      %798 = vmatpush.msra.mxu0 0.0
      %799 = vmatpush.msra.mxu0 0.0
      %800 = vmatpush.msra.mxu0 0.0
      %801 = vmatpush.msra.mxu0 0.0
      %802 = vmatpush.msra.mxu0 0.0
      %803 = vmatpush.msra.mxu0 0.0
      %804 = vmatpush.msra.mxu0 0.0
      %805 = vmatpush.msra.mxu0 0.0
      %806 = vmatpush.msra.mxu0 0.0
      %807 = vmatpush.msra.mxu0 0.0
      %808 = vmatpush.msra.mxu0 %v787
      %809 = vmatpush.msra.mxu0 %v786
      %810 = vmatpush.msra.mxu0 %v785
      %811 = vmatpush.msra.mxu0 %v784
      %812 = vmatmul.f32.gmra.mxu0 %v794
      %v813 = vpop.f32.mrf.mxu0
      %v814 = vadd.f32 %v790, %v813
      %815 = vdwg.mxu0
      %816 = vst [vmem:[#allocation2] sm:$0xff] %v814
    $region45: #{tpu_custom_call.1} parent=1 // pred_fallthru
      _
    // Predicated region
    $region46: #{tpu_custom_call.1} parent=1 // pred_check
      _
    $region47: #{tpu_custom_call.1} parent=1 // pred_check_branch
      %818 = sbr.rel (0) target = $region49
    $region48: #{tpu_custom_call.1} parent=1 // pred_region
      %820 = vsyncadd [#allocation3], 0
      %s822 = sshll.u32 [#allocation2], 4
      %s823 = int_to_ptr.vmem [resolvable:$true] %s822
      %s824 = sshll.u32 %s9, 4
      %s825 = int_to_ptr.hbm [resolvable:$true] %s824
      %827 = dma.vmem_to_hbm [thread:$0]  %s823, 128, %s825, [#allocation3]
    $region49: #{tpu_custom_call.1} parent=1 // pred_fallthru
      _
    // Predicated region
    $region50: #{tpu_custom_call.1} parent=1 // pred_check
      _
    $region51: #{tpu_custom_call.1} parent=1 // pred_check_branch
      %829 = sbr.rel (0) target = $region53
    $region52: #{tpu_custom_call.1} parent=1 // pred_region
      %831 = vsyncadd [#allocation5], 0
      %s833 = sshll.u32 [#allocation4], 4
      %s834 = int_to_ptr.vmem [resolvable:$true] %s833
      %s835 = sshll.u32 %s10, 4
      %s836 = int_to_ptr.hbm [resolvable:$true] %s835
      %838 = dma.vmem_to_hbm [thread:$0]  %s834, 128, %s836, [#allocation5]
    $region53: #{tpu_custom_call.1} parent=1 // pred_fallthru
      _
    // Predicated region
    $region54: #{tpu_custom_call.1} parent=1 // pred_check
      _
    $region55: #{tpu_custom_call.1} parent=1 // pred_check_branch
      %840 = sbr.rel (0) target = $region57
    $region56: #{tpu_custom_call.1} parent=1 // pred_region
      %842 = dma.done [#allocation3], 128
    $region57: #{tpu_custom_call.1} parent=1 // pred_fallthru
      _
    // Predicated region
    $region58: #{tpu_custom_call.1} parent=1 // pred_check
      _
    $region59: #{tpu_custom_call.1} parent=1 // pred_check_branch
      %844 = sbr.rel (0) target = $region61
    $region60: #{tpu_custom_call.1} parent=1 // pred_region
      %846 = dma.done [#allocation5], 128
    $region61: #{tpu_custom_call.1} parent=1 // pred_fallthru
      _
    %847 = vsyncpa [#allocation3], 1
    %848 = vsyncpa [#allocation5], 1

</llo_original>
